<compile_context>
chip_gen: v7x
topology: tpu7x:2x2x1
jax: 0.10.0
libtpu: 0.0.40
codegen_flags: <defaults>
</compile_context>

<pallas_src>
import math

import jax
import jax.numpy as jnp
from jax.experimental import pallas as pl
from jax.experimental.pallas import tpu as pltpu

N_OUT = 6        # true output width of layer_out
OUT_PAD = 128    # lane-dense padded output width


def mlp_kernel(x_ref,
               w1_ref, b1_ref,
               w2_ref, b2_ref,
               w3_ref, b3_ref,
               wo_ref, bo_ref,
               o_ref):
    x = x_ref[...]

    h = jnp.dot(x, w1_ref[...], preferred_element_type=jnp.float32) + b1_ref[...]
    h = jnp.maximum(h, 0.0)

    h = jnp.dot(h, w2_ref[...], preferred_element_type=jnp.float32) + b2_ref[...]
    h = jnp.maximum(h, 0.0)

    h = jnp.dot(h, w3_ref[...], preferred_element_type=jnp.float32) + b3_ref[...]
    h = jnp.maximum(h, 0.0)

    # wo/bo are zero-padded to 128 output columns -> full-lane (unmasked) store.
    o_ref[...] = (jnp.dot(h, wo_ref[...], preferred_element_type=jnp.float32)
                  + bo_ref[...]).astype(o_ref.dtype)


def _round_up(n, m):
    return ((n + m - 1) // m) * m


def regression_net_forward(x, params, *, tile_b=1024):
    """x: [B, 8] float32 -> [B, 6] float32."""
    B, d_in = x.shape
    (w1, b1), (w2, b2), (w3, b3), (wo, bo) = params

    # Zero-pad the final layer to 128 output columns (cols 6..127 are zero).
    wo_p = jnp.zeros((wo.shape[0], OUT_PAD), wo.dtype).at[:, :N_OUT].set(wo)
    bo_p = jnp.zeros((1, OUT_PAD), bo.dtype).at[:, :N_OUT].set(bo)

    # Batch tile: multiple of 8 (sublanes), never larger than the padded batch.
    tb = min(tile_b, _round_up(B, 8))
    b_pad = _round_up(B, tb)
    if b_pad != B:
        x = jnp.pad(x, ((0, b_pad - B), (0, 0)))

    grid = (b_pad // tb,)

    def const_spec(a):
        # Whole-array block, same block for every grid step -> stays VMEM-resident.
        return pl.BlockSpec(a.shape, lambda i: (0, 0))

    out = pl.pallas_call(
        mlp_kernel,
        out_shape=jax.ShapeDtypeStruct((b_pad, OUT_PAD), jnp.float32),
        grid=grid,
        in_specs=[
            pl.BlockSpec((tb, d_in), lambda i: (i, 0)),   # x: tiled over batch
            const_spec(w1), const_spec(b1),
            const_spec(w2), const_spec(b2),
            const_spec(w3), const_spec(b3),
            const_spec(wo_p), const_spec(bo_p),
        ],
        out_specs=pl.BlockSpec((tb, OUT_PAD), lambda i: (i, 0)),
        compiler_params=pltpu.CompilerParams(
            dimension_semantics=("parallel",)),
    )(x, w1, b1, w2, b2, w3, b3, wo_p, bo_p)

    return out[:B, :N_OUT]


def init_params(key):
    """Deterministic init mirroring torch.nn.Linear's U(-1/sqrt(fan_in), +1/sqrt(fan_in)).

    Weights are returned already transposed to [in, out]."""
    dims = [(8, 32), (32, 64), (64, 64), (64, N_OUT)]
    params = []
    for (fan_in, fan_out) in dims:
        key, kw, kb = jax.random.split(key, 3)
        bound = 1.0 / math.sqrt(fan_in)
        w = jax.random.uniform(kw, (fan_in, fan_out), jnp.float32, -bound, bound)
        b = jax.random.uniform(kb, (1, fan_out), jnp.float32, -bound, bound)
        params.append((w, b))
    return params


def reference_forward(x, params):
    h = x
    for i, (w, b) in enumerate(params):
        h = h @ w + b
        if i < len(params) - 1:
            h = jnp.maximum(h, 0.0)
    return h


if __name__ == "__main__":
    key = jax.random.PRNGKey(0)
    key, kx1, kx2 = jax.random.split(key, 3)
    params = init_params(key)

    # Small main test (single grid step).
    batch = 8
    x = jax.random.normal(kx1, (batch, 8), jnp.float32)
    out = jax.block_until_ready(regression_net_forward(x, params))
    ref = reference_forward(x, params)
    assert out.shape == (batch, N_OUT)
    assert jnp.allclose(out, ref, atol=1e-5, rtol=1e-5)

    # Secondary test exercising the batch grid + padding path (B not a
    # multiple of the tile; multiple grid steps).
    batch2 = 200
    x2 = jax.random.normal(kx2, (batch2, 8), jnp.float32)
    out2 = jax.block_until_ready(regression_net_forward(x2, params, tile_b=64))
    ref2 = reference_forward(x2, params)
    assert out2.shape == (batch2, N_OUT)
    assert jnp.allclose(out2, ref2, atol=1e-5, rtol=1e-5)

    print("KERNEL_OK")
</pallas_src>

<mosaic_0001>
module attributes {stable_mosaic.version = 11 : i64} {
  func.func @mlp_kernel(%arg0: i32, %arg1: memref<8x8xf32, #tpu.memory_space<vmem>>, %arg2: memref<8x32xf32, #tpu.memory_space<vmem>>, %arg3: memref<1x32xf32, #tpu.memory_space<vmem>>, %arg4: memref<32x64xf32, #tpu.memory_space<vmem>>, %arg5: memref<1x64xf32, #tpu.memory_space<vmem>>, %arg6: memref<64x64xf32, #tpu.memory_space<vmem>>, %arg7: memref<1x64xf32, #tpu.memory_space<vmem>>, %arg8: memref<64x128xf32, #tpu.memory_space<vmem>>, %arg9: memref<1x128xf32, #tpu.memory_space<vmem>>, %arg10: memref<8x128xf32, #tpu.memory_space<vmem>>) attributes {dimension_semantics = [#tpu.dimension_semantics<parallel>], iteration_bounds = array<i64: 1>, scalar_prefetch = 0 : i64, scratch_operands = 0 : i64, tpu.core_type = #tpu.core_type<tc>, window_params = [{transform_indices = @transform_0, window_bounds = array<i64: 8, 8>}, {pipeline_mode = #tpu.pipeline_mode<synchronous>, transform_indices = @transform_1, window_bounds = array<i64: 8, 32>}, {pipeline_mode = #tpu.pipeline_mode<synchronous>, transform_indices = @transform_2, window_bounds = array<i64: 1, 32>}, {pipeline_mode = #tpu.pipeline_mode<synchronous>, transform_indices = @transform_3, window_bounds = array<i64: 32, 64>}, {pipeline_mode = #tpu.pipeline_mode<synchronous>, transform_indices = @transform_4, window_bounds = array<i64: 1, 64>}, {pipeline_mode = #tpu.pipeline_mode<synchronous>, transform_indices = @transform_5, window_bounds = array<i64: 64, 64>}, {pipeline_mode = #tpu.pipeline_mode<synchronous>, transform_indices = @transform_6, window_bounds = array<i64: 1, 64>}, {pipeline_mode = #tpu.pipeline_mode<synchronous>, transform_indices = @transform_7, window_bounds = array<i64: 64, 128>}, {pipeline_mode = #tpu.pipeline_mode<synchronous>, transform_indices = @transform_8, window_bounds = array<i64: 1, 128>}, {transform_indices = @transform_9, window_bounds = array<i64: 8, 128>}]} {
    %c0 = arith.constant 0 : index
    %c0_0 = arith.constant 0 : index
    %0 = vector.load %arg1[%c0, %c0_0] : memref<8x8xf32, #tpu.memory_space<vmem>>, vector<8x8xf32>
    %c0_1 = arith.constant 0 : index
    %c0_2 = arith.constant 0 : index
    %1 = vector.load %arg2[%c0_1, %c0_2] : memref<8x32xf32, #tpu.memory_space<vmem>>, vector<8x32xf32>
    %cst = arith.constant dense<0.000000e+00> : vector<8x32xf32>
    %2 = tpu.matmul %0, %1, %cst {dimension_numbers = #tpu.dot_dimension_numbers<[1], [0], [0], [1], [0, 0, 1, 1], [], []>} : vector<8x8xf32>, vector<8x32xf32>, vector<8x32xf32> -> vector<8x32xf32>
    %c0_3 = arith.constant 0 : index
    %c0_4 = arith.constant 0 : index
    %3 = vector.load %arg3[%c0_3, %c0_4] : memref<1x32xf32, #tpu.memory_space<vmem>>, vector<1x32xf32>
    %4 = vector.broadcast %3 : vector<1x32xf32> to vector<8x32xf32>
    %5 = arith.addf %2, %4 : vector<8x32xf32>
    %cst_5 = arith.constant 0.000000e+00 : f32
    %6 = vector.broadcast %cst_5 : f32 to vector<8x32xf32>
    %7 = arith.maximumf %5, %6 : vector<8x32xf32>
    %c0_6 = arith.constant 0 : index
    %c0_7 = arith.constant 0 : index
    %8 = vector.load %arg4[%c0_6, %c0_7] : memref<32x64xf32, #tpu.memory_space<vmem>>, vector<32x64xf32>
    %cst_8 = arith.constant dense<0.000000e+00> : vector<8x64xf32>
    %9 = tpu.matmul %7, %8, %cst_8 {dimension_numbers = #tpu.dot_dimension_numbers<[1], [0], [0], [1], [0, 0, 1, 1], [], []>} : vector<8x32xf32>, vector<32x64xf32>, vector<8x64xf32> -> vector<8x64xf32>
    %c0_9 = arith.constant 0 : index
    %c0_10 = arith.constant 0 : index
    %10 = vector.load %arg5[%c0_9, %c0_10] : memref<1x64xf32, #tpu.memory_space<vmem>>, vector<1x64xf32>
    %11 = vector.broadcast %10 : vector<1x64xf32> to vector<8x64xf32>
    %12 = arith.addf %9, %11 : vector<8x64xf32>
    %cst_11 = arith.constant 0.000000e+00 : f32
    %13 = vector.broadcast %cst_11 : f32 to vector<8x64xf32>
    %14 = arith.maximumf %12, %13 : vector<8x64xf32>
    %c0_12 = arith.constant 0 : index
    %c0_13 = arith.constant 0 : index
    %15 = vector.load %arg6[%c0_12, %c0_13] : memref<64x64xf32, #tpu.memory_space<vmem>>, vector<64x64xf32>
    %cst_14 = arith.constant dense<0.000000e+00> : vector<8x64xf32>
    %16 = tpu.matmul %14, %15, %cst_14 {dimension_numbers = #tpu.dot_dimension_numbers<[1], [0], [0], [1], [0, 0, 1, 1], [], []>} : vector<8x64xf32>, vector<64x64xf32>, vector<8x64xf32> -> vector<8x64xf32>
    %c0_15 = arith.constant 0 : index
    %c0_16 = arith.constant 0 : index
    %17 = vector.load %arg7[%c0_15, %c0_16] : memref<1x64xf32, #tpu.memory_space<vmem>>, vector<1x64xf32>
    %18 = vector.broadcast %17 : vector<1x64xf32> to vector<8x64xf32>
    %19 = arith.addf %16, %18 : vector<8x64xf32>
    %cst_17 = arith.constant 0.000000e+00 : f32
    %20 = vector.broadcast %cst_17 : f32 to vector<8x64xf32>
    %21 = arith.maximumf %19, %20 : vector<8x64xf32>
    %c0_18 = arith.constant 0 : index
    %c0_19 = arith.constant 0 : index
    %22 = vector.load %arg8[%c0_18, %c0_19] : memref<64x128xf32, #tpu.memory_space<vmem>>, vector<64x128xf32>
    %cst_20 = arith.constant dense<0.000000e+00> : vector<8x128xf32>
    %23 = tpu.matmul %21, %22, %cst_20 {dimension_numbers = #tpu.dot_dimension_numbers<[1], [0], [0], [1], [0, 0, 1, 1], [], []>} : vector<8x64xf32>, vector<64x128xf32>, vector<8x128xf32> -> vector<8x128xf32>
    %c0_21 = arith.constant 0 : index
    %c0_22 = arith.constant 0 : index
    %24 = vector.load %arg9[%c0_21, %c0_22] : memref<1x128xf32, #tpu.memory_space<vmem>>, vector<1x128xf32>
    %25 = vector.broadcast %24 : vector<1x128xf32> to vector<8x128xf32>
    %26 = arith.addf %23, %25 : vector<8x128xf32>
    %c0_23 = arith.constant 0 : index
    %c0_24 = arith.constant 0 : index
    %27 = vector.load %arg10[%c0_23, %c0_24] : memref<8x128xf32, #tpu.memory_space<vmem>>, vector<8x128xf32>
    tpu.vector_store %arg10[%c0_23, %c0_24], %26 {strides = array<i32>} : memref<8x128xf32, #tpu.memory_space<vmem>>, vector<8x128xf32>,
    return
  }
  func.func @transform_0(%arg0: i32) -> (i32, i32) {
    %c0_i32 = arith.constant 0 : i32
    %c0_i32_0 = arith.constant 0 : i32
    return %arg0, %c0_i32 : i32, i32
  }
  func.func @transform_1(%arg0: i32) -> (i32, i32) {
    %c0_i32 = arith.constant 0 : i32
    %c0_i32_0 = arith.constant 0 : i32
    %c0_i32_1 = arith.constant 0 : i32
    return %c0_i32, %c0_i32_0 : i32, i32
  }
  func.func @transform_2(%arg0: i32) -> (i32, i32) {
    %c0_i32 = arith.constant 0 : i32
    %c0_i32_0 = arith.constant 0 : i32
    %c0_i32_1 = arith.constant 0 : i32
    return %c0_i32, %c0_i32_0 : i32, i32
  }
  func.func @transform_3(%arg0: i32) -> (i32, i32) {
    %c0_i32 = arith.constant 0 : i32
    %c0_i32_0 = arith.constant 0 : i32
    %c0_i32_1 = arith.constant 0 : i32
    return %c0_i32, %c0_i32_0 : i32, i32
  }
  func.func @transform_4(%arg0: i32) -> (i32, i32) {
    %c0_i32 = arith.constant 0 : i32
    %c0_i32_0 = arith.constant 0 : i32
    %c0_i32_1 = arith.constant 0 : i32
    return %c0_i32, %c0_i32_0 : i32, i32
  }
  func.func @transform_5(%arg0: i32) -> (i32, i32) {
    %c0_i32 = arith.constant 0 : i32
    %c0_i32_0 = arith.constant 0 : i32
    %c0_i32_1 = arith.constant 0 : i32
    return %c0_i32, %c0_i32_0 : i32, i32
  }
  func.func @transform_6(%arg0: i32) -> (i32, i32) {
    %c0_i32 = arith.constant 0 : i32
    %c0_i32_0 = arith.constant 0 : i32
    %c0_i32_1 = arith.constant 0 : i32
    return %c0_i32, %c0_i32_0 : i32, i32
  }
  func.func @transform_7(%arg0: i32) -> (i32, i32) {
    %c0_i32 = arith.constant 0 : i32
    %c0_i32_0 = arith.constant 0 : i32
    %c0_i32_1 = arith.constant 0 : i32
    return %c0_i32, %c0_i32_0 : i32, i32
  }
  func.func @transform_8(%arg0: i32) -> (i32, i32) {
    %c0_i32 = arith.constant 0 : i32
    %c0_i32_0 = arith.constant 0 : i32
    %c0_i32_1 = arith.constant 0 : i32
    return %c0_i32, %c0_i32_0 : i32, i32
  }
  func.func @transform_9(%arg0: i32) -> (i32, i32) {
    %c0_i32 = arith.constant 0 : i32
    %c0_i32_0 = arith.constant 0 : i32
    return %arg0, %c0_i32 : i32, i32
  }
}

</mosaic_0001>

<llo_original>
// kernel: tpu_custom_call.1
$region0: #{tpu_custom_call.1}
  #allocation0 [shape = 'u32[]', space=smem, size = 0x4, offset = 0x4, fixed_abs, tag = 'smem constant byte address 0x4 - core index']
  #allocation1 [shape = 'u32[144,128]{1,0:T(1,128)}', space=vmem, size = 0x12000, scoped, tag = 'internal scratch']
  %s0 = inlined_call_operand.hbm [shape: f32[8,8], index: 0, kind: input, shape index: {}]
  %s1 = inlined_call_operand.hbm [shape: f32[8,32], index: 1, kind: input, shape index: {}]
  %s2 = inlined_call_operand.vmem [shape: f32[1,32], index: 2, kind: input, shape index: {}]
  %s3 = inlined_call_operand.hbm [shape: f32[32,64], index: 3, kind: input, shape index: {}]
  %s4 = inlined_call_operand.vmem [shape: f32[1,64], index: 4, kind: input, shape index: {}]
  %s5 = inlined_call_operand.hbm [shape: f32[64,64], index: 5, kind: input, shape index: {}]
  %s6 = inlined_call_operand.vmem [shape: f32[1,64], index: 6, kind: input, shape index: {}]
  %s7 = inlined_call_operand.hbm [shape: f32[64,128], index: 7, kind: input, shape index: {}]
  %s8 = inlined_call_operand.vmem [shape: f32[1,128], index: 8, kind: input, shape index: {}]
  %s9 = inlined_call_operand.hbm [shape: f32[8,128], index: 9, kind: output, shape index: {}]
  %s10 = sld [smem:[#allocation0]]
  $region66: #{tpu_custom_call.1} parent=0
    _
  %s12 = ssub.s32 1, %s10
  %s13 = scalar_select 0, %s12, %s10
  $region1: #{tpu_custom_call.1} parent=0
    #allocation2 [shape = 'u8[4096]{0}', space=vmem, size = 0x1000, scoped, tag = 'input window, operand 0, single buffered']
    #allocation3 [shape = 's32[1]{0}', space=sflag, size = 0x4, scoped, tag = 'scoped memory for tpu_custom_call.1']
    #allocation4 [shape = 's32[1]{0}', space=sflag, size = 0x4, scoped, tag = 'scoped memory for tpu_custom_call.1']
    #allocation5 [shape = 'u8[4096]{0}', space=vmem, size = 0x1000, scoped, tag = 'input window, operand 1, single buffered']
    #allocation6 [shape = 's32[1]{0}', space=sflag, size = 0x4, scoped, tag = 'scoped memory for tpu_custom_call.1']
    #allocation7 [shape = 'u8[16384]{0}', space=vmem, size = 0x4000, scoped, tag = 'input window, operand 3, single buffered']
    #allocation8 [shape = 'u8[32768]{0}', space=vmem, size = 0x8000, scoped, tag = 'input window, operand 5, single buffered']
    #allocation9 [shape = 's32[1]{0}', space=sflag, size = 0x4, scoped, tag = 'scoped memory for tpu_custom_call.1']
    #allocation10 [shape = 'u8[32768]{0}', space=vmem, size = 0x8000, scoped, tag = 'input window, operand 7, single buffered']
    #allocation11 [shape = 'u8[4096]{0}', space=vmem, size = 0x1000, scoped, tag = 'output window, operand 0, single buffered']
    %14 = vsyncpa [#allocation3], 0
    %15 = vsyncpa [#allocation6], 0
    %16 = vsyncpa [#allocation9], 0
    %17 = vsyncpa [#allocation4], 0
    // Predicated region
    $region2: #{tpu_custom_call.1} parent=1 // pred_check
      _
    $region3: #{tpu_custom_call.1} parent=1 // pred_check_branch
      %19 = sbr.rel (0) target = $region5
    $region4: #{tpu_custom_call.1} parent=1 // pred_region
      %s21 = ssub.s32 128, 128
      %22 = vsyncadd [#allocation3], %s21
      %s24 = sshll.u32 [#allocation2], 4
      %s25 = int_to_ptr.vmem [resolvable:$true] %s24
      %27 = dma.hbm_to_vmem [thread:$0]  %s0, 128, %s25, [#allocation3]
    $region5: #{tpu_custom_call.1} parent=1 // pred_fallthru
      _
    // Predicated region
    $region6: #{tpu_custom_call.1} parent=1 // pred_check
      _
    $region7: #{tpu_custom_call.1} parent=1 // pred_check_branch
      %29 = sbr.rel (0) target = $region9
    $region8: #{tpu_custom_call.1} parent=1 // pred_region
      %s31 = ssub.s32 128, 128
      %32 = vsyncadd [#allocation6], %s31
      %s34 = sshll.u32 [#allocation5], 4
      %s35 = int_to_ptr.vmem [resolvable:$true] %s34
      %37 = dma.hbm_to_vmem [thread:$0]  %s1, 128, %s35, [#allocation6]
    $region9: #{tpu_custom_call.1} parent=1 // pred_fallthru
      _
    // Predicated region
    $region10: #{tpu_custom_call.1} parent=1 // pred_check
      _
    $region11: #{tpu_custom_call.1} parent=1 // pred_check_branch
      %39 = sbr.rel (0) target = $region13
    $region12: #{tpu_custom_call.1} parent=1 // pred_region
      _
    $region13: #{tpu_custom_call.1} parent=1 // pred_fallthru
      _
    // Predicated region
    $region14: #{tpu_custom_call.1} parent=1 // pred_check
      _
    $region15: #{tpu_custom_call.1} parent=1 // pred_check_branch
      %41 = sbr.rel (0) target = $region17
    $region16: #{tpu_custom_call.1} parent=1 // pred_region
      %s43 = ssub.s32 512, 512
      %44 = vsyncadd [#allocation6], %s43
      %s45 = sshll.u32 [#allocation7], 4
      %s46 = int_to_ptr.vmem [resolvable:$true] %s45
      %51 = dma.hbm_to_vmem [thread:$0]  %s3, 512, %s46, [#allocation6], 128, 128, 8
    $region17: #{tpu_custom_call.1} parent=1 // pred_fallthru
      _
    // Predicated region
    $region18: #{tpu_custom_call.1} parent=1 // pred_check
      _
    $region19: #{tpu_custom_call.1} parent=1 // pred_check_branch
      %53 = sbr.rel (0) target = $region21
    $region20: #{tpu_custom_call.1} parent=1 // pred_region
      _
    $region21: #{tpu_custom_call.1} parent=1 // pred_fallthru
      _
    // Predicated region
    $region22: #{tpu_custom_call.1} parent=1 // pred_check
      _
    $region23: #{tpu_custom_call.1} parent=1 // pred_check_branch
      %55 = sbr.rel (0) target = $region25
    $region24: #{tpu_custom_call.1} parent=1 // pred_region
      %s57 = ssub.s32 1024, 1024
      %58 = vsyncadd [#allocation9], %s57
      %s59 = sshll.u32 [#allocation8], 4
      %s60 = int_to_ptr.vmem [resolvable:$true] %s59
      %65 = dma.hbm_to_vmem [thread:$0]  %s5, 1024, %s60, [#allocation9], 128, 128, 8
    $region25: #{tpu_custom_call.1} parent=1 // pred_fallthru
      _
    // Predicated region
    $region26: #{tpu_custom_call.1} parent=1 // pred_check
      _
    $region27: #{tpu_custom_call.1} parent=1 // pred_check_branch
      %67 = sbr.rel (0) target = $region29
    $region28: #{tpu_custom_call.1} parent=1 // pred_region
      _
    $region29: #{tpu_custom_call.1} parent=1 // pred_fallthru
      _
    // Predicated region
    $region30: #{tpu_custom_call.1} parent=1 // pred_check
      _
    $region31: #{tpu_custom_call.1} parent=1 // pred_check_branch
      %69 = sbr.rel (0) target = $region33
    $region32: #{tpu_custom_call.1} parent=1 // pred_region
      %s71 = ssub.s32 1024, 1024
      %72 = vsyncadd [#allocation9], %s71
      %s73 = sshll.u32 [#allocation10], 4
      %s74 = int_to_ptr.vmem [resolvable:$true] %s73
      %79 = dma.hbm_to_vmem [thread:$0]  %s7, 1024, %s74, [#allocation9], 128, 128, 8
    $region33: #{tpu_custom_call.1} parent=1 // pred_fallthru
      _
    // Predicated region
    $region34: #{tpu_custom_call.1} parent=1 // pred_check
      _
    $region35: #{tpu_custom_call.1} parent=1 // pred_check_branch
      %81 = sbr.rel (0) target = $region37
    $region36: #{tpu_custom_call.1} parent=1 // pred_region
      _
    $region37: #{tpu_custom_call.1} parent=1 // pred_fallthru
      _
    // Predicated region
    $region38: #{tpu_custom_call.1} parent=1 // pred_check
      _
    $region39: #{tpu_custom_call.1} parent=1 // pred_check_branch
      %83 = sbr.rel (0) target = $region41
    $region40: #{tpu_custom_call.1} parent=1 // pred_region
      %84 = dma.done [#allocation3], 128
    $region41: #{tpu_custom_call.1} parent=1 // pred_fallthru
      _
    // Predicated region
    $region42: #{tpu_custom_call.1} parent=1 // pred_check
      _
    $region43: #{tpu_custom_call.1} parent=1 // pred_check_branch
      %86 = sbr.rel (0) target = $region45
    $region44: #{tpu_custom_call.1} parent=1 // pred_region
      %87 = dma.done [#allocation6], 128
    $region45: #{tpu_custom_call.1} parent=1 // pred_fallthru
      _
    // Predicated region
    $region46: #{tpu_custom_call.1} parent=1 // pred_check
      _
    $region47: #{tpu_custom_call.1} parent=1 // pred_check_branch
      %89 = sbr.rel (0) target = $region49
    $region48: #{tpu_custom_call.1} parent=1 // pred_region
      %90 = dma.done [#allocation6], 512
    $region49: #{tpu_custom_call.1} parent=1 // pred_fallthru
      _
    // Predicated region
    $region50: #{tpu_custom_call.1} parent=1 // pred_check
      _
    $region51: #{tpu_custom_call.1} parent=1 // pred_check_branch
      %92 = sbr.rel (0) target = $region53
    $region52: #{tpu_custom_call.1} parent=1 // pred_region
      %93 = dma.done [#allocation9], 1024
    $region53: #{tpu_custom_call.1} parent=1 // pred_fallthru
      _
    // Predicated region
    $region54: #{tpu_custom_call.1} parent=1 // pred_check
      _
    $region55: #{tpu_custom_call.1} parent=1 // pred_check_branch
      %95 = sbr.rel (0) target = $region57
    $region56: #{tpu_custom_call.1} parent=1 // pred_region
      %96 = dma.done [#allocation9], 1024
    $region57: #{tpu_custom_call.1} parent=1 // pred_fallthru
      _
    %v97 = vld [vmem:[#allocation2] sm:$0xff]
    %v98 = vld [vmem:[#allocation5] sm:$0xff]
    %v99 = vld [vmem:[%s2] sm:$0x1]
    %v101 = vlaneseq
    %v102 = vshrl.u32 %v101, 7
    %v103 = vsub.s32 0, %v102
    %v104 = vrot.slane %v99, %v103
    %vm106 = vcmask 64512
    %v108 = vsel %vm106, %v97, 0
    %110 = vmatprep.subr.mxu0 0.0
    %111 = vmatpush1.msra.mxu0 %v98
    %112 = vmatprep.subr.mxu0 0.0
    %113 = vmatpush1.msra.mxu0 0.0
    %114 = vmatprep.subr.mxu0 0.0
    %115 = vmatpush1.msra.mxu0 0.0
    %116 = vmatprep.subr.mxu0 0.0
    %117 = vmatpush1.msra.mxu0 0.0
    %118 = vmatprep.subr.mxu0 0.0
    %119 = vmatpush1.msra.mxu0 0.0
    %120 = vmatprep.subr.mxu0 0.0
    %121 = vmatpush1.msra.mxu0 0.0
    %122 = vmatprep.subr.mxu0 0.0
    %123 = vmatpush1.msra.mxu0 0.0
    %124 = vmatprep.subr.mxu0 0.0
    %125 = vmatpush1.msra.mxu0 0.0
    %126 = vmatprep.subr.mxu0 0.0
    %127 = vmatpush1.msra.mxu0 0.0
    %128 = vmatprep.subr.mxu0 0.0
    %129 = vmatpush1.msra.mxu0 0.0
    %130 = vmatprep.subr.mxu0 0.0
    %131 = vmatpush1.msra.mxu0 0.0
    %132 = vmatprep.subr.mxu0 0.0
    %133 = vmatpush1.msra.mxu0 0.0
    %134 = vmatprep.subr.mxu0 0.0
    %135 = vmatpush1.msra.mxu0 0.0
    %136 = vmatprep.subr.mxu0 0.0
    %137 = vmatpush1.msra.mxu0 0.0
    %138 = vmatprep.subr.mxu0 0.0
    %139 = vmatpush1.msra.mxu0 0.0
    %140 = vmatprep.subr.mxu0 0.0
    %141 = vmatpush1.msra.mxu0 0.0
    %142 = vmatprep.subr.mxu0 0.0
    %143 = vmatpush1.msra.mxu0 0.0
    %144 = vmatprep.subr.mxu0 0.0
    %145 = vmatpush1.msra.mxu0 0.0
    %146 = vmatprep.subr.mxu0 0.0
    %147 = vmatpush1.msra.mxu0 0.0
    %148 = vmatprep.subr.mxu0 0.0
    %149 = vmatpush1.msra.mxu0 0.0
    %150 = vmatprep.subr.mxu0 0.0
    %151 = vmatpush1.msra.mxu0 0.0
    %152 = vmatprep.subr.mxu0 0.0
    %153 = vmatpush1.msra.mxu0 0.0
    %154 = vmatprep.subr.mxu0 0.0
    %155 = vmatpush1.msra.mxu0 0.0
    %156 = vmatprep.subr.mxu0 0.0
    %157 = vmatpush1.msra.mxu0 0.0
    %158 = vmatprep.subr.mxu0 0.0
    %159 = vmatpush1.msra.mxu0 0.0
    %160 = vmatprep.subr.mxu0 0.0
    %161 = vmatpush1.msra.mxu0 0.0
    %162 = vmatprep.subr.mxu0 0.0
    %163 = vmatpush1.msra.mxu0 0.0
    %164 = vmatprep.subr.mxu0 0.0
    %165 = vmatpush1.msra.mxu0 0.0
    %166 = vmatprep.subr.mxu0 0.0
    %167 = vmatpush1.msra.mxu0 0.0
    %168 = vmatprep.subr.mxu0 0.0
    %169 = vmatpush1.msra.mxu0 0.0
    %170 = vmatprep.subr.mxu0 0.0
    %171 = vmatpush1.msra.mxu0 0.0
    %172 = vmatprep.subr.mxu0 0.0
    %173 = vmatpush1.msra.mxu0 0.0
    %174 = vmatprep.mubr.f32.mxu0 0.0
    %175 = vmatmul.mubr.f32.gmra.mrb[0].mxu0 %v108
    %v176 = vpop.f32.mrb[0].mxu0
    %v177 = vadd.f32 %v104, %v176
    %v178 = vpop.f32.mrb[0].mxu0
    %179 = vdwg.mxu0
    %v180 = vmax.f32 %v177, 0.0
    %v181 = vld [vmem:[#allocation7] sm:$0xff]
    %v182 = vld [vmem:[#allocation7 + $0x8] sm:$0xff]
    %v183 = vld [vmem:[#allocation7 + $0x10] sm:$0xff]
    %v184 = vld [vmem:[#allocation7 + $0x18] sm:$0xff]
    %v185 = vld [vmem:[%s4] sm:$0x1]
    %v187 = vlaneseq
    %v188 = vshrl.u32 %v187, 7
    %v189 = vsub.s32 0, %v188
    %v190 = vrot.slane %v185, %v189
    %vm192 = vcmask 261120
    %v194 = vsel %vm192, %v180, 0
    %196 = vmatprep.subr.mxu0 0.0
    %197 = vmatpush1.msra.mxu0 %v181
    %198 = vmatprep.subr.mxu0 0.0
    %199 = vmatpush1.msra.mxu0 %v182
    %200 = vmatprep.subr.mxu0 0.0
    %201 = vmatpush1.msra.mxu0 %v183
    %202 = vmatprep.subr.mxu0 0.0
    %203 = vmatpush1.msra.mxu0 %v184
    %204 = vmatprep.subr.mxu0 0.0
    %205 = vmatpush1.msra.mxu0 0.0
    %206 = vmatprep.subr.mxu0 0.0
    %207 = vmatpush1.msra.mxu0 0.0
    %208 = vmatprep.subr.mxu0 0.0
    %209 = vmatpush1.msra.mxu0 0.0
    %210 = vmatprep.subr.mxu0 0.0
    %211 = vmatpush1.msra.mxu0 0.0
    %212 = vmatprep.subr.mxu0 0.0
    %213 = vmatpush1.msra.mxu0 0.0
    %214 = vmatprep.subr.mxu0 0.0
    %215 = vmatpush1.msra.mxu0 0.0
    %216 = vmatprep.subr.mxu0 0.0
    %217 = vmatpush1.msra.mxu0 0.0
    %218 = vmatprep.subr.mxu0 0.0
    %219 = vmatpush1.msra.mxu0 0.0
    %220 = vmatprep.subr.mxu0 0.0
    %221 = vmatpush1.msra.mxu0 0.0
    %222 = vmatprep.subr.mxu0 0.0
    %223 = vmatpush1.msra.mxu0 0.0
    %224 = vmatprep.subr.mxu0 0.0
    %225 = vmatpush1.msra.mxu0 0.0
    %226 = vmatprep.subr.mxu0 0.0
    %227 = vmatpush1.msra.mxu0 0.0
    %228 = vmatprep.subr.mxu0 0.0
    %229 = vmatpush1.msra.mxu0 0.0
    %230 = vmatprep.subr.mxu0 0.0
    %231 = vmatpush1.msra.mxu0 0.0
    %232 = vmatprep.subr.mxu0 0.0
    %233 = vmatpush1.msra.mxu0 0.0
    %234 = vmatprep.subr.mxu0 0.0
    %235 = vmatpush1.msra.mxu0 0.0
    %236 = vmatprep.subr.mxu0 0.0
    %237 = vmatpush1.msra.mxu0 0.0
    %238 = vmatprep.subr.mxu0 0.0
    %239 = vmatpush1.msra.mxu0 0.0
    %240 = vmatprep.subr.mxu0 0.0
    %241 = vmatpush1.msra.mxu0 0.0
    %242 = vmatprep.subr.mxu0 0.0
    %243 = vmatpush1.msra.mxu0 0.0
    %244 = vmatprep.subr.mxu0 0.0
    %245 = vmatpush1.msra.mxu0 0.0
    %246 = vmatprep.subr.mxu0 0.0
    %247 = vmatpush1.msra.mxu0 0.0
    %248 = vmatprep.subr.mxu0 0.0
    %249 = vmatpush1.msra.mxu0 0.0
    %250 = vmatprep.subr.mxu0 0.0
    %251 = vmatpush1.msra.mxu0 0.0
    %252 = vmatprep.subr.mxu0 0.0
    %253 = vmatpush1.msra.mxu0 0.0
    %254 = vmatprep.subr.mxu0 0.0
    %255 = vmatpush1.msra.mxu0 0.0
    %256 = vmatprep.subr.mxu0 0.0
    %257 = vmatpush1.msra.mxu0 0.0
    %258 = vmatprep.subr.mxu0 0.0
    %259 = vmatpush1.msra.mxu0 0.0
    %260 = vmatprep.mubr.f32.mxu0 0.0
    %261 = vmatmul.mubr.f32.gmra.mrb[0].mxu0 %v194
    %v262 = vpop.f32.mrb[0].mxu0
    %v263 = vadd.f32 %v190, %v262
    %v264 = vpop.f32.mrb[0].mxu0
    %265 = vdwg.mxu0
    %v266 = vmax.f32 %v263, 0.0
    %v267 = vld [vmem:[#allocation8] sm:$0xff]
    %v268 = vld [vmem:[#allocation8 + $0x8] sm:$0xff]
    %v269 = vld [vmem:[#allocation8 + $0x10] sm:$0xff]
    %v270 = vld [vmem:[#allocation8 + $0x18] sm:$0xff]
    %v271 = vld [vmem:[#allocation8 + $0x20] sm:$0xff]
    %v272 = vld [vmem:[#allocation8 + $0x28] sm:$0xff]
    %v273 = vld [vmem:[#allocation8 + $0x30] sm:$0xff]
    %v274 = vld [vmem:[#allocation8 + $0x38] sm:$0xff]
    %v275 = vld [vmem:[%s6] sm:$0x1]
    %v277 = vlaneseq
    %v278 = vshrl.u32 %v277, 7
    %v279 = vsub.s32 0, %v278
    %v280 = vrot.slane %v275, %v279
    %vm282 = vcmask 523264
    %v284 = vsel %vm282, %v266, 0
    %286 = vmatprep.subr.mxu0 0.0
    %287 = vmatpush1.msra.mxu0 %v267
    %288 = vmatprep.subr.mxu0 0.0
    %289 = vmatpush1.msra.mxu0 %v268
    %290 = vmatprep.subr.mxu0 0.0
    %291 = vmatpush1.msra.mxu0 %v269
    %292 = vmatprep.subr.mxu0 0.0
    %293 = vmatpush1.msra.mxu0 %v270
    %294 = vmatprep.subr.mxu0 0.0
    %295 = vmatpush1.msra.mxu0 %v271
    %296 = vmatprep.subr.mxu0 0.0
    %297 = vmatpush1.msra.mxu0 %v272
    %298 = vmatprep.subr.mxu0 0.0
    %299 = vmatpush1.msra.mxu0 %v273
    %300 = vmatprep.subr.mxu0 0.0
    %301 = vmatpush1.msra.mxu0 %v274
    %302 = vmatprep.subr.mxu0 0.0
    %303 = vmatpush1.msra.mxu0 0.0
    %304 = vmatprep.subr.mxu0 0.0
    %305 = vmatpush1.msra.mxu0 0.0
    %306 = vmatprep.subr.mxu0 0.0
    %307 = vmatpush1.msra.mxu0 0.0
    %308 = vmatprep.subr.mxu0 0.0
    %309 = vmatpush1.msra.mxu0 0.0
    %310 = vmatprep.subr.mxu0 0.0
    %311 = vmatpush1.msra.mxu0 0.0
    %312 = vmatprep.subr.mxu0 0.0
    %313 = vmatpush1.msra.mxu0 0.0
    %314 = vmatprep.subr.mxu0 0.0
    %315 = vmatpush1.msra.mxu0 0.0
    %316 = vmatprep.subr.mxu0 0.0
    %317 = vmatpush1.msra.mxu0 0.0
    %318 = vmatprep.subr.mxu0 0.0
    %319 = vmatpush1.msra.mxu0 0.0
    %320 = vmatprep.subr.mxu0 0.0
    %321 = vmatpush1.msra.mxu0 0.0
    %322 = vmatprep.subr.mxu0 0.0
    %323 = vmatpush1.msra.mxu0 0.0
    %324 = vmatprep.subr.mxu0 0.0
    %325 = vmatpush1.msra.mxu0 0.0
    %326 = vmatprep.subr.mxu0 0.0
    %327 = vmatpush1.msra.mxu0 0.0
    %328 = vmatprep.subr.mxu0 0.0
    %329 = vmatpush1.msra.mxu0 0.0
    %330 = vmatprep.subr.mxu0 0.0
    %331 = vmatpush1.msra.mxu0 0.0
    %332 = vmatprep.subr.mxu0 0.0
    %333 = vmatpush1.msra.mxu0 0.0
    %334 = vmatprep.subr.mxu0 0.0
    %335 = vmatpush1.msra.mxu0 0.0
    %336 = vmatprep.subr.mxu0 0.0
    %337 = vmatpush1.msra.mxu0 0.0
    %338 = vmatprep.subr.mxu0 0.0
    %339 = vmatpush1.msra.mxu0 0.0
    %340 = vmatprep.subr.mxu0 0.0
    %341 = vmatpush1.msra.mxu0 0.0
    %342 = vmatprep.subr.mxu0 0.0
    %343 = vmatpush1.msra.mxu0 0.0
    %344 = vmatprep.subr.mxu0 0.0
    %345 = vmatpush1.msra.mxu0 0.0
    %346 = vmatprep.subr.mxu0 0.0
    %347 = vmatpush1.msra.mxu0 0.0
    %348 = vmatprep.subr.mxu0 0.0
    %349 = vmatpush1.msra.mxu0 0.0
    %350 = vmatprep.mubr.f32.mxu0 0.0
    %351 = vmatmul.mubr.f32.gmra.mrb[0].mxu0 %v284
    %v352 = vpop.f32.mrb[0].mxu0
    %v353 = vadd.f32 %v280, %v352
    %v354 = vpop.f32.mrb[0].mxu0
    %355 = vdwg.mxu0
    %v356 = vmax.f32 %v353, 0.0
    %v357 = vld [vmem:[#allocation10] sm:$0xff]
    %v358 = vld [vmem:[#allocation10 + $0x8] sm:$0xff]
    %v359 = vld [vmem:[#allocation10 + $0x10] sm:$0xff]
    %v360 = vld [vmem:[#allocation10 + $0x18] sm:$0xff]
    %v361 = vld [vmem:[#allocation10 + $0x20] sm:$0xff]
    %v362 = vld [vmem:[#allocation10 + $0x28] sm:$0xff]
    %v363 = vld [vmem:[#allocation10 + $0x30] sm:$0xff]
    %v364 = vld [vmem:[#allocation10 + $0x38] sm:$0xff]
    %v365 = vld [vmem:[%s8] sm:$0x1]
    %v367 = vlaneseq
    %v368 = vshrl.u32 %v367, 7
    %v369 = vsub.s32 0, %v368
    %v370 = vrot.slane %v365, %v369
    %v373 = vsel %vm282, %v356, 0
    %375 = vmatprep.subr.mxu0 0.0
    %376 = vmatpush1.msra.mxu0 %v357
    %377 = vmatprep.subr.mxu0 0.0
    %378 = vmatpush1.msra.mxu0 %v358
    %379 = vmatprep.subr.mxu0 0.0
    %380 = vmatpush1.msra.mxu0 %v359
    %381 = vmatprep.subr.mxu0 0.0
    %382 = vmatpush1.msra.mxu0 %v360
    %383 = vmatprep.subr.mxu0 0.0
    %384 = vmatpush1.msra.mxu0 %v361
    %385 = vmatprep.subr.mxu0 0.0
    %386 = vmatpush1.msra.mxu0 %v362
    %387 = vmatprep.subr.mxu0 0.0
    %388 = vmatpush1.msra.mxu0 %v363
    %389 = vmatprep.subr.mxu0 0.0
    %390 = vmatpush1.msra.mxu0 %v364
    %391 = vmatprep.subr.mxu0 0.0
    %392 = vmatpush1.msra.mxu0 0.0
    %393 = vmatprep.subr.mxu0 0.0
    %394 = vmatpush1.msra.mxu0 0.0
    %395 = vmatprep.subr.mxu0 0.0
    %396 = vmatpush1.msra.mxu0 0.0
    %397 = vmatprep.subr.mxu0 0.0
    %398 = vmatpush1.msra.mxu0 0.0
    %399 = vmatprep.subr.mxu0 0.0
    %400 = vmatpush1.msra.mxu0 0.0
    %401 = vmatprep.subr.mxu0 0.0
    %402 = vmatpush1.msra.mxu0 0.0
    %403 = vmatprep.subr.mxu0 0.0
    %404 = vmatpush1.msra.mxu0 0.0
    %405 = vmatprep.subr.mxu0 0.0
    %406 = vmatpush1.msra.mxu0 0.0
    %407 = vmatprep.subr.mxu0 0.0
    %408 = vmatpush1.msra.mxu0 0.0
    %409 = vmatprep.subr.mxu0 0.0
    %410 = vmatpush1.msra.mxu0 0.0
    %411 = vmatprep.subr.mxu0 0.0
    %412 = vmatpush1.msra.mxu0 0.0
    %413 = vmatprep.subr.mxu0 0.0
    %414 = vmatpush1.msra.mxu0 0.0
    %415 = vmatprep.subr.mxu0 0.0
    %416 = vmatpush1.msra.mxu0 0.0
    %417 = vmatprep.subr.mxu0 0.0
    %418 = vmatpush1.msra.mxu0 0.0
    %419 = vmatprep.subr.mxu0 0.0
    %420 = vmatpush1.msra.mxu0 0.0
    %421 = vmatprep.subr.mxu0 0.0
    %422 = vmatpush1.msra.mxu0 0.0
    %423 = vmatprep.subr.mxu0 0.0
    %424 = vmatpush1.msra.mxu0 0.0
    %425 = vmatprep.subr.mxu0 0.0
    %426 = vmatpush1.msra.mxu0 0.0
    %427 = vmatprep.subr.mxu0 0.0
    %428 = vmatpush1.msra.mxu0 0.0
    %429 = vmatprep.subr.mxu0 0.0
    %430 = vmatpush1.msra.mxu0 0.0
    %431 = vmatprep.subr.mxu0 0.0
    %432 = vmatpush1.msra.mxu0 0.0
    %433 = vmatprep.subr.mxu0 0.0
    %434 = vmatpush1.msra.mxu0 0.0
    %435 = vmatprep.subr.mxu0 0.0
    %436 = vmatpush1.msra.mxu0 0.0
    %437 = vmatprep.subr.mxu0 0.0
    %438 = vmatpush1.msra.mxu0 0.0
    %439 = vmatprep.mubr.f32.mxu0 0.0
    %440 = vmatmul.mubr.f32.gmra.mrb[0].mxu0 %v373
    %v441 = vpop.f32.mrb[0].mxu0
    %v442 = vadd.f32 %v370, %v441
    %v443 = vpop.f32.mrb[0].mxu0
    %444 = vdwg.mxu0
    %445 = vst [vmem:[#allocation11] sm:$0xff] %v442
    // Predicated region
    $region58: #{tpu_custom_call.1} parent=1 // pred_check
      _
    $region59: #{tpu_custom_call.1} parent=1 // pred_check_branch
      %447 = sbr.rel (0) target = $region61
    $region60: #{tpu_custom_call.1} parent=1 // pred_region
      %s449 = ssub.s32 128, 128
      %450 = vsyncadd [#allocation4], %s449
      %s452 = sshll.u32 [#allocation11], 4
      %s453 = int_to_ptr.vmem [resolvable:$true] %s452
      %455 = dma.vmem_to_hbm [thread:$0]  %s453, 128, %s9, [#allocation4]
    $region61: #{tpu_custom_call.1} parent=1 // pred_fallthru
      _
    // Predicated region
    $region62: #{tpu_custom_call.1} parent=1 // pred_check
      _
    $region63: #{tpu_custom_call.1} parent=1 // pred_check_branch
      %457 = sbr.rel (0) target = $region65
    $region64: #{tpu_custom_call.1} parent=1 // pred_region
      %458 = dma.done [#allocation4], 128
    $region65: #{tpu_custom_call.1} parent=1 // pred_fallthru
      _
    %459 = vsyncpa [#allocation3], 1
    %460 = vsyncpa [#allocation6], 1
    %461 = vsyncpa [#allocation9], 1
    %462 = vsyncpa [#allocation4], 1

</llo_original>
